<compile_context>
chip_gen: v7x
topology: tpu7x:2x2x1
jax: 0.10.0
libtpu: 0.0.40
codegen_flags: <defaults>
</compile_context>

<pallas_src>
import jax
import jax.numpy as jnp
import numpy as np
from jax import lax
from jax.experimental import pallas as pl
from jax.experimental.pallas import tpu as pltpu


# ----------------------------- Pallas kernel --------------------------------

def lstm_stack_kernel(x_ref, h0_ref, c0_ref, w_ref, b_ref,
                      h_out_ref, c_out_ref):
    """Fused multi-layer, single-timestep LSTM step (batch=1).

    x_ref     : (1, Dmax)        layer-0 input, zero-padded from E to Dmax
    h0_ref    : (L, 1, H)        previous hidden states
    c0_ref    : (L, 1, H)        previous cell states
    w_ref     : (L, Dmax+H, 4H)  fused [W_ih^T ; W_hh^T], gate cols [i,f,o,g]
    b_ref     : (L, 1, 4H)       combined bias b_ih + b_hh, gate cols [i,f,o,g]
    h_out_ref : (L, 1, H)
    c_out_ref : (L, 1, H)
    """
    num_layers, _, h_dim = h0_ref.shape
    d_max = x_ref.shape[1]

    def layer_step(layer, x_in):
        h_prev = h0_ref[layer]                              # (1, H)
        c_prev = c0_ref[layer]                              # (1, H)
        xh = jnp.concatenate([x_in, h_prev], axis=1)        # (1, Dmax+H)
        # Single MXU matmul per layer, f32 accumulation.
        gates = (jnp.dot(xh, w_ref[layer],
                         preferred_element_type=jnp.float32)
                 + b_ref[layer])                            # (1, 4H)
        # Gate order [i, f, o | g]: one sigmoid over 3H, one tanh over H.
        sig = jax.nn.sigmoid(gates[:, :3 * h_dim])
        i_g = sig[:, 0 * h_dim:1 * h_dim]
        f_g = sig[:, 1 * h_dim:2 * h_dim]
        o_g = sig[:, 2 * h_dim:3 * h_dim]
        g_g = jnp.tanh(gates[:, 3 * h_dim:])

        c_new = f_g * c_prev + i_g * g_g
        h_new = o_g * jnp.tanh(c_new)

        h_out_ref[layer] = h_new.astype(h_out_ref.dtype)
        c_out_ref[layer] = c_new.astype(c_out_ref.dtype)

        # Next layer's input (pad back to Dmax if embed_size > hidden_size).
        if d_max == h_dim:
            return h_new
        return jnp.concatenate(
            [h_new, jnp.zeros((1, d_max - h_dim), h_new.dtype)], axis=1)

    lax.fori_loop(0, num_layers, layer_step, x_ref[...], unroll=True)


# ------------------------- parameter init / packing --------------------------

def init_lstm_params(key, embed_size, hidden_size, num_layers):
    """PyTorch-style nn.LSTM params: uniform(-1/sqrt(H), 1/sqrt(H)),
    weights (4H, in) / (4H, H), gate row-order [i, f, g, o]."""
    params = []
    bound = 1.0 / np.sqrt(hidden_size)
    for layer in range(num_layers):
        in_sz = embed_size if layer == 0 else hidden_size
        key, k1, k2, k3, k4 = jax.random.split(key, 5)
        params.append({
            "w_ih": jax.random.uniform(k1, (4 * hidden_size, in_sz),
                                       minval=-bound, maxval=bound,
                                       dtype=jnp.float32),
            "w_hh": jax.random.uniform(k2, (4 * hidden_size, hidden_size),
                                       minval=-bound, maxval=bound,
                                       dtype=jnp.float32),
            "b_ih": jax.random.uniform(k3, (4 * hidden_size,),
                                       minval=-bound, maxval=bound,
                                       dtype=jnp.float32),
            "b_hh": jax.random.uniform(k4, (4 * hidden_size,),
                                       minval=-bound, maxval=bound,
                                       dtype=jnp.float32),
        })
    return params


def pack_lstm_params(params, embed_size, hidden_size):
    """Pack PyTorch-style per-layer params into the fused kernel layout.

    Returns:
      W : (L, Dmax+H, 4H)  concat([W_ih^T (zero-padded to Dmax rows); W_hh^T])
                           with gate columns reordered [i, f, o, g]
      B : (L, 1, 4H)       b_ih + b_hh, gate columns [i, f, o, g]
    """
    h = hidden_size
    d_max = max(embed_size, hidden_size)
    # PyTorch gate order [i, f, g, o] -> kernel order [i, f, o, g].
    perm = np.concatenate([np.arange(0, h),            # i
                           np.arange(h, 2 * h),        # f
                           np.arange(3 * h, 4 * h),    # o
                           np.arange(2 * h, 3 * h)])   # g
    w_blocks, b_blocks = [], []
    for p in params:
        w_ih_t = p["w_ih"][perm].T                      # (in_sz, 4H)
        w_hh_t = p["w_hh"][perm].T                      # (H, 4H)
        in_sz = w_ih_t.shape[0]
        if in_sz < d_max:
            w_ih_t = jnp.pad(w_ih_t, ((0, d_max - in_sz), (0, 0)))
        w_blocks.append(jnp.concatenate([w_ih_t, w_hh_t], axis=0))
        b_blocks.append((p["b_ih"] + p["b_hh"])[perm].reshape(1, -1))
    return jnp.stack(w_blocks, axis=0), jnp.stack(b_blocks, axis=0)


# --------------------------- LSTMEncoder wrapper -----------------------------

@jax.jit
def lstm_encoder_forward(w_packed, b_packed, inp, hidden, cell):
    """Mirrors LSTMEncoder.forward: input.view(1,1,-1) -> one LSTM time step.

    Returns (output (1,1,H), hidden (L,1,H), cell (L,1,H)).
    """
    num_layers, _, hidden_size = hidden.shape
    d_max = w_packed.shape[1] - hidden_size

    x = inp.reshape(1, -1).astype(jnp.float32)          # (1, E); seq=batch=1
    e = x.shape[1]
    if e < d_max:
        x = jnp.pad(x, ((0, 0), (0, d_max - e)))

    # Advisory cost hints for the XLA scheduler.
    flops = 2 * num_layers * (d_max + hidden_size) * 4 * hidden_size
    transcendentals = num_layers * 5 * hidden_size
    bytes_accessed = 4 * (w_packed.size + b_packed.size + x.size
                          + 2 * hidden.size + 2 * cell.size
                          + 2 * num_layers * hidden_size)

    vmem = pl.BlockSpec(memory_space=pltpu.MemorySpace.VMEM)
    h_out, c_out = pl.pallas_call(
        lstm_stack_kernel,
        out_shape=(jax.ShapeDtypeStruct((num_layers, 1, hidden_size),
                                        jnp.float32),
                   jax.ShapeDtypeStruct((num_layers, 1, hidden_size),
                                        jnp.float32)),
        in_specs=[vmem] * 5,
        out_specs=(vmem, vmem),
        compiler_params=pltpu.CompilerParams(),
        cost_estimate=pl.CostEstimate(flops=flops,
                                      transcendentals=transcendentals,
                                      bytes_accessed=bytes_accessed),
    )(x, hidden.astype(jnp.float32), cell.astype(jnp.float32),
      w_packed, b_packed)

    output = h_out[num_layers - 1].reshape(1, 1, hidden_size)
    return output, h_out, c_out


# ------------------------------ pure-JAX ref ---------------------------------

def lstm_encoder_ref(params, inp, hidden, cell):
    """Faithful PyTorch nn.LSTM math (eval mode, seq=1, batch=1)."""
    x = inp.reshape(1, -1).astype(jnp.float32)
    h_dim = hidden.shape[2]
    new_h, new_c = [], []
    layer_in = x
    for layer, p in enumerate(params):
        h_prev, c_prev = hidden[layer], cell[layer]
        gates = (layer_in @ p["w_ih"].T + h_prev @ p["w_hh"].T
                 + p["b_ih"] + p["b_hh"])
        i_g = jax.nn.sigmoid(gates[:, 0 * h_dim:1 * h_dim])
        f_g = jax.nn.sigmoid(gates[:, 1 * h_dim:2 * h_dim])
        g_g = jnp.tanh(gates[:, 2 * h_dim:3 * h_dim])
        o_g = jax.nn.sigmoid(gates[:, 3 * h_dim:4 * h_dim])
        c_new = f_g * c_prev + i_g * g_g
        h_new = o_g * jnp.tanh(c_new)
        new_h.append(h_new)
        new_c.append(c_new)
        layer_in = h_new
        # TODO(synk): nn.LSTM inter-layer dropout (train-mode, stochastic) is
        # not modeled; eval-mode (identity) semantics implemented.
    return (layer_in.reshape(1, 1, -1),
            jnp.stack(new_h, axis=0),
            jnp.stack(new_c, axis=0))


# ---------------------------------- main -------------------------------------

if __name__ == "__main__":
    embed_size = 32
    hidden_size = 32
    num_layers = 2
    batch_size = 1          # forward() forces seq=1, batch=1 via view(1, 1, -1)
    drop_out_prob = 0.0

    key = jax.random.PRNGKey(0)
    k_params, k_in, k_h, k_c = jax.random.split(key, 4)

    params = init_lstm_params(k_params, embed_size, hidden_size, num_layers)
    w_packed, b_packed = pack_lstm_params(params, embed_size, hidden_size)

    inp = jax.random.normal(k_in, (1, embed_size), dtype=jnp.float32)
    # initHiddenCell(): randn(num_layers, batch_size, hidden_size)
    hidden0 = jax.random.normal(k_h, (num_layers, batch_size, hidden_size),
                                dtype=jnp.float32)
    cell0 = jax.random.normal(k_c, (num_layers, batch_size, hidden_size),
                              dtype=jnp.float32)

    out, h_out, c_out = lstm_encoder_forward(w_packed, b_packed,
                                             inp, hidden0, cell0)
    jax.block_until_ready((out, h_out, c_out))

    ref_out, ref_h, ref_c = lstm_encoder_ref(params, inp, hidden0, cell0)
    assert out.shape == (1, 1, hidden_size)
    assert h_out.shape == (num_layers, batch_size, hidden_size)
    assert c_out.shape == (num_layers, batch_size, hidden_size)
    np.testing.assert_allclose(np.asarray(out), np.asarray(ref_out),
                               rtol=1e-5, atol=2e-5)
    np.testing.assert_allclose(np.asarray(h_out), np.asarray(ref_h),
                               rtol=1e-5, atol=2e-5)
    np.testing.assert_allclose(np.asarray(c_out), np.asarray(ref_c),
                               rtol=1e-5, atol=2e-5)

    print("KERNEL_OK")
</pallas_src>

<mosaic_0001>
module attributes {stable_mosaic.version = 11 : i64} {
  func.func @lstm_stack_kernel(%arg0: memref<1x32xf32, #tpu.memory_space<vmem>>, %arg1: memref<2x1x32xf32, #tpu.memory_space<vmem>>, %arg2: memref<2x1x32xf32, #tpu.memory_space<vmem>>, %arg3: memref<2x64x128xf32, #tpu.memory_space<vmem>>, %arg4: memref<2x1x128xf32, #tpu.memory_space<vmem>>, %arg5: memref<2x1x32xf32, #tpu.memory_space<vmem>>, %arg6: memref<2x1x32xf32, #tpu.memory_space<vmem>>) attributes {dimension_semantics = [], scalar_prefetch = 0 : i64, scratch_operands = 0 : i64, tpu.core_type = #tpu.core_type<tc>} {
    %c0 = arith.constant 0 : index
    %c0_0 = arith.constant 0 : index
    %0 = vector.load %arg0[%c0, %c0_0] : memref<1x32xf32, #tpu.memory_space<vmem>>, vector<1x32xf32>
    %c0_i32 = arith.constant 0 : i32
    %1 = arith.index_cast %c0_i32 : i32 to index
    %c0_1 = arith.constant 0 : index
    %c0_2 = arith.constant 0 : index
    %2 = vector.load %arg1[%1, %c0_1, %c0_2] : memref<2x1x32xf32, #tpu.memory_space<vmem>>, vector<1x1x32xf32>
    %3 = vector.shape_cast %2 : vector<1x1x32xf32> to vector<1x32xf32>
    %4 = arith.index_cast %c0_i32 : i32 to index
    %c0_3 = arith.constant 0 : index
    %c0_4 = arith.constant 0 : index
    %5 = vector.load %arg2[%4, %c0_3, %c0_4] : memref<2x1x32xf32, #tpu.memory_space<vmem>>, vector<1x1x32xf32>
    %6 = vector.shape_cast %5 : vector<1x1x32xf32> to vector<1x32xf32>
    %7 = tpu.concatenate %0, %3 in 1 : vector<1x32xf32>, vector<1x32xf32> -> vector<1x64xf32>
    %8 = arith.index_cast %c0_i32 : i32 to index
    %c0_5 = arith.constant 0 : index
    %c0_6 = arith.constant 0 : index
    %9 = vector.load %arg3[%8, %c0_5, %c0_6] : memref<2x64x128xf32, #tpu.memory_space<vmem>>, vector<1x64x128xf32>
    %10 = vector.shape_cast %9 : vector<1x64x128xf32> to vector<64x128xf32>
    %cst = arith.constant dense<0.000000e+00> : vector<1x128xf32>
    %11 = tpu.matmul %7, %10, %cst {dimension_numbers = #tpu.dot_dimension_numbers<[1], [0], [0], [1], [0, 0, 1, 1], [], []>} : vector<1x64xf32>, vector<64x128xf32>, vector<1x128xf32> -> vector<1x128xf32>
    %12 = arith.index_cast %c0_i32 : i32 to index
    %c0_7 = arith.constant 0 : index
    %c0_8 = arith.constant 0 : index
    %13 = vector.load %arg4[%12, %c0_7, %c0_8] : memref<2x1x128xf32, #tpu.memory_space<vmem>>, vector<1x1x128xf32>
    %14 = vector.shape_cast %13 : vector<1x1x128xf32> to vector<1x128xf32>
    %15 = arith.addf %11, %14 : vector<1x128xf32>
    %16 = vector.extract_strided_slice %15 {offsets = [0, 0], sizes = [1, 96], strides = [1, 1]} : vector<1x128xf32> to vector<1x96xf32>
    %17 = arith.negf %16 : vector<1x96xf32>
    %18 = math.exp %17 : vector<1x96xf32>
    %cst_9 = arith.constant 1.000000e+00 : f32
    %19 = vector.broadcast %cst_9 : f32 to vector<1x96xf32>
    %20 = arith.addf %19, %18 : vector<1x96xf32>
    %21 = arith.divf %19, %20 : vector<1x96xf32>
    %22 = vector.extract_strided_slice %21 {offsets = [0, 0], sizes = [1, 32], strides = [1, 1]} : vector<1x96xf32> to vector<1x32xf32>
    %23 = vector.extract_strided_slice %21 {offsets = [0, 32], sizes = [1, 32], strides = [1, 1]} : vector<1x96xf32> to vector<1x32xf32>
    %24 = vector.extract_strided_slice %21 {offsets = [0, 64], sizes = [1, 32], strides = [1, 1]} : vector<1x96xf32> to vector<1x32xf32>
    %25 = vector.extract_strided_slice %15 {offsets = [0, 96], sizes = [1, 32], strides = [1, 1]} : vector<1x128xf32> to vector<1x32xf32>
    %26 = math.tanh %25 : vector<1x32xf32>
    %27 = arith.mulf %23, %6 : vector<1x32xf32>
    %28 = arith.mulf %22, %26 : vector<1x32xf32>
    %29 = arith.addf %27, %28 : vector<1x32xf32>
    %30 = math.tanh %29 : vector<1x32xf32>
    %31 = arith.mulf %24, %30 : vector<1x32xf32>
    %32 = arith.index_cast %c0_i32 : i32 to index
    %c0_10 = arith.constant 0 : index
    %c0_11 = arith.constant 0 : index
    %33 = vector.load %arg5[%32, %c0_10, %c0_11] : memref<2x1x32xf32, #tpu.memory_space<vmem>>, vector<1x1x32xf32>
    %34 = vector.shape_cast %33 : vector<1x1x32xf32> to vector<1x32xf32>
    %35 = vector.shape_cast %31 : vector<1x32xf32> to vector<1x1x32xf32>
    tpu.vector_store %arg5[%32, %c0_10, %c0_11], %35 {strides = array<i32>} : memref<2x1x32xf32, #tpu.memory_space<vmem>>, vector<1x1x32xf32>,
    %36 = arith.index_cast %c0_i32 : i32 to index
    %c0_12 = arith.constant 0 : index
    %c0_13 = arith.constant 0 : index
    %37 = vector.load %arg6[%36, %c0_12, %c0_13] : memref<2x1x32xf32, #tpu.memory_space<vmem>>, vector<1x1x32xf32>
    %38 = vector.shape_cast %37 : vector<1x1x32xf32> to vector<1x32xf32>
    %39 = vector.shape_cast %29 : vector<1x32xf32> to vector<1x1x32xf32>
    tpu.vector_store %arg6[%36, %c0_12, %c0_13], %39 {strides = array<i32>} : memref<2x1x32xf32, #tpu.memory_space<vmem>>, vector<1x1x32xf32>,
    %c1_i32 = arith.constant 1 : i32
    %40 = arith.index_cast %c1_i32 : i32 to index
    %c0_14 = arith.constant 0 : index
    %c0_15 = arith.constant 0 : index
    %41 = vector.load %arg1[%40, %c0_14, %c0_15] : memref<2x1x32xf32, #tpu.memory_space<vmem>>, vector<1x1x32xf32>
    %42 = vector.shape_cast %41 : vector<1x1x32xf32> to vector<1x32xf32>
    %43 = arith.index_cast %c1_i32 : i32 to index
    %c0_16 = arith.constant 0 : index
    %c0_17 = arith.constant 0 : index
    %44 = vector.load %arg2[%43, %c0_16, %c0_17] : memref<2x1x32xf32, #tpu.memory_space<vmem>>, vector<1x1x32xf32>
    %45 = vector.shape_cast %44 : vector<1x1x32xf32> to vector<1x32xf32>
    %46 = tpu.concatenate %31, %42 in 1 : vector<1x32xf32>, vector<1x32xf32> -> vector<1x64xf32>
    %47 = arith.index_cast %c1_i32 : i32 to index
    %c0_18 = arith.constant 0 : index
    %c0_19 = arith.constant 0 : index
    %48 = vector.load %arg3[%47, %c0_18, %c0_19] : memref<2x64x128xf32, #tpu.memory_space<vmem>>, vector<1x64x128xf32>
    %49 = vector.shape_cast %48 : vector<1x64x128xf32> to vector<64x128xf32>
    %cst_20 = arith.constant dense<0.000000e+00> : vector<1x128xf32>
    %50 = tpu.matmul %46, %49, %cst_20 {dimension_numbers = #tpu.dot_dimension_numbers<[1], [0], [0], [1], [0, 0, 1, 1], [], []>} : vector<1x64xf32>, vector<64x128xf32>, vector<1x128xf32> -> vector<1x128xf32>
    %51 = arith.index_cast %c1_i32 : i32 to index
    %c0_21 = arith.constant 0 : index
    %c0_22 = arith.constant 0 : index
    %52 = vector.load %arg4[%51, %c0_21, %c0_22] : memref<2x1x128xf32, #tpu.memory_space<vmem>>, vector<1x1x128xf32>
    %53 = vector.shape_cast %52 : vector<1x1x128xf32> to vector<1x128xf32>
    %54 = arith.addf %50, %53 : vector<1x128xf32>
    %55 = vector.extract_strided_slice %54 {offsets = [0, 0], sizes = [1, 96], strides = [1, 1]} : vector<1x128xf32> to vector<1x96xf32>
    %56 = arith.negf %55 : vector<1x96xf32>
    %57 = math.exp %56 : vector<1x96xf32>
    %cst_23 = arith.constant 1.000000e+00 : f32
    %58 = vector.broadcast %cst_23 : f32 to vector<1x96xf32>
    %59 = arith.addf %58, %57 : vector<1x96xf32>
    %60 = arith.divf %58, %59 : vector<1x96xf32>
    %61 = vector.extract_strided_slice %60 {offsets = [0, 0], sizes = [1, 32], strides = [1, 1]} : vector<1x96xf32> to vector<1x32xf32>
    %62 = vector.extract_strided_slice %60 {offsets = [0, 32], sizes = [1, 32], strides = [1, 1]} : vector<1x96xf32> to vector<1x32xf32>
    %63 = vector.extract_strided_slice %60 {offsets = [0, 64], sizes = [1, 32], strides = [1, 1]} : vector<1x96xf32> to vector<1x32xf32>
    %64 = vector.extract_strided_slice %54 {offsets = [0, 96], sizes = [1, 32], strides = [1, 1]} : vector<1x128xf32> to vector<1x32xf32>
    %65 = math.tanh %64 : vector<1x32xf32>
    %66 = arith.mulf %62, %45 : vector<1x32xf32>
    %67 = arith.mulf %61, %65 : vector<1x32xf32>
    %68 = arith.addf %66, %67 : vector<1x32xf32>
    %69 = math.tanh %68 : vector<1x32xf32>
    %70 = arith.mulf %63, %69 : vector<1x32xf32>
    %71 = arith.index_cast %c1_i32 : i32 to index
    %c0_24 = arith.constant 0 : index
    %c0_25 = arith.constant 0 : index
    %72 = vector.load %arg5[%71, %c0_24, %c0_25] : memref<2x1x32xf32, #tpu.memory_space<vmem>>, vector<1x1x32xf32>
    %73 = vector.shape_cast %72 : vector<1x1x32xf32> to vector<1x32xf32>
    %74 = vector.shape_cast %70 : vector<1x32xf32> to vector<1x1x32xf32>
    tpu.vector_store %arg5[%71, %c0_24, %c0_25], %74 {strides = array<i32>} : memref<2x1x32xf32, #tpu.memory_space<vmem>>, vector<1x1x32xf32>,
    %75 = arith.index_cast %c1_i32 : i32 to index
    %c0_26 = arith.constant 0 : index
    %c0_27 = arith.constant 0 : index
    %76 = vector.load %arg6[%75, %c0_26, %c0_27] : memref<2x1x32xf32, #tpu.memory_space<vmem>>, vector<1x1x32xf32>
    %77 = vector.shape_cast %76 : vector<1x1x32xf32> to vector<1x32xf32>
    %78 = vector.shape_cast %68 : vector<1x32xf32> to vector<1x1x32xf32>
    tpu.vector_store %arg6[%75, %c0_26, %c0_27], %78 {strides = array<i32>} : memref<2x1x32xf32, #tpu.memory_space<vmem>>, vector<1x1x32xf32>,
    %c2_i32 = arith.constant 2 : i32
    return
  }
}

</mosaic_0001>

<llo_original>
// kernel: lstm_encoder_forward.1
$region0: #{lstm_encoder_forward.1}
  #allocation0 [shape = 'u32[]', space=smem, size = 0x4, offset = 0x4, fixed_abs, tag = 'smem constant byte address 0x4 - core index']
  #allocation1 [shape = 'u32[144,128]{1,0:T(1,128)}', space=vmem, size = 0x12000, scoped, tag = 'internal scratch']
  %s0 = inlined_call_operand.vmem [shape: f32[1,32], index: 0, kind: input, shape index: {}]
  %s1 = inlined_call_operand.vmem [shape: f32[2,1,32], index: 1, kind: input, shape index: {}]
  %s2 = inlined_call_operand.vmem [shape: f32[2,1,32], index: 2, kind: input, shape index: {}]
  %s3 = inlined_call_operand.hbm [shape: f32[2,64,128], index: 3, kind: input, shape index: {}]
  %s4 = inlined_call_operand.hbm [shape: f32[2,1,128], index: 4, kind: input, shape index: {}]
  %s5 = inlined_call_operand.vmem [shape: f32[2,1,32], index: 5, kind: output, shape index: {0}]
  %s6 = inlined_call_operand.hbm [shape: f32[2,1,32], index: 6, kind: output, shape index: {1}]
  %7 = xla_tuple %s5, %s6
  %s8 = sld [smem:[#allocation0]]
  $region46: #{lstm_encoder_forward.1} parent=0
    _
  %s10 = ssub.s32 1, %s8
  %s11 = scalar_select 0, %s10, %s8
  $region1: #{lstm_encoder_forward.1} parent=0
    #allocation2 [shape = 'u8[65536]{0}', space=vmem, size = 0x10000, scoped, tag = 'input window, operand 3, single buffered']
    #allocation3 [shape = 's32[1]{0}', space=sflag, size = 0x4, scoped, tag = 'scoped memory for lstm_encoder_forward.1']
    #allocation4 [shape = 's32[1]{0}', space=sflag, size = 0x4, scoped, tag = 'scoped memory for lstm_encoder_forward.1']
    #allocation5 [shape = 'u8[1024]{0}', space=vmem, size = 0x400, scoped, tag = 'input window, operand 4, single buffered']
    #allocation6 [shape = 's32[1]{0}', space=sflag, size = 0x4, scoped, tag = 'scoped memory for lstm_encoder_forward.1']
    #allocation7 [shape = 'u8[1024]{0}', space=vmem, size = 0x400, scoped, tag = 'output window, operand 1, single buffered']
    %12 = vsyncpa [#allocation3], 0
    %13 = vsyncpa [#allocation6], 0
    %14 = vsyncpa [#allocation4], 0
    // Predicated region
    $region2: #{lstm_encoder_forward.1} parent=1 // pred_check
      _
    $region3: #{lstm_encoder_forward.1} parent=1 // pred_check_branch
      %16 = sbr.rel (0) target = $region5
    $region4: #{lstm_encoder_forward.1} parent=1 // pred_region
      _
    $region5: #{lstm_encoder_forward.1} parent=1 // pred_fallthru
      _
    // Predicated region
    $region6: #{lstm_encoder_forward.1} parent=1 // pred_check
      _
    $region7: #{lstm_encoder_forward.1} parent=1 // pred_check_branch
      %18 = sbr.rel (0) target = $region9
    $region8: #{lstm_encoder_forward.1} parent=1 // pred_region
      _
    $region9: #{lstm_encoder_forward.1} parent=1 // pred_fallthru
      _
    // Predicated region
    $region10: #{lstm_encoder_forward.1} parent=1 // pred_check
      _
    $region11: #{lstm_encoder_forward.1} parent=1 // pred_check_branch
      %20 = sbr.rel (0) target = $region13
    $region12: #{lstm_encoder_forward.1} parent=1 // pred_region
      _
    $region13: #{lstm_encoder_forward.1} parent=1 // pred_fallthru
      _
    // Predicated region
    $region14: #{lstm_encoder_forward.1} parent=1 // pred_check
      _
    $region15: #{lstm_encoder_forward.1} parent=1 // pred_check_branch
      %22 = sbr.rel (0) target = $region17
    $region16: #{lstm_encoder_forward.1} parent=1 // pred_region
      %s24 = ssub.s32 2048, 2048
      %25 = vsyncadd [#allocation3], %s24
      %s26 = sshll.u32 [#allocation2], 4
      %s27 = int_to_ptr.vmem [resolvable:$true] %s26
      %32 = dma.hbm_to_vmem [thread:$0]  %s3, 2048, %s27, [#allocation3], 128, 128, 8
    $region17: #{lstm_encoder_forward.1} parent=1 // pred_fallthru
      _
    // Predicated region
    $region18: #{lstm_encoder_forward.1} parent=1 // pred_check
      _
    $region19: #{lstm_encoder_forward.1} parent=1 // pred_check_branch
      %34 = sbr.rel (0) target = $region21
    $region20: #{lstm_encoder_forward.1} parent=1 // pred_region
      %s36 = ssub.s32 32, 32
      %37 = vsyncadd [#allocation6], %s36
      %s38 = sshll.u32 [#allocation5], 4
      %s39 = int_to_ptr.vmem [resolvable:$true] %s38
      %44 = dma.hbm_to_vmem [thread:$0]  %s4, 32, %s39, [#allocation6], 16, 16, 1
    $region21: #{lstm_encoder_forward.1} parent=1 // pred_fallthru
      _
    // Predicated region
    $region22: #{lstm_encoder_forward.1} parent=1 // pred_check
      _
    $region23: #{lstm_encoder_forward.1} parent=1 // pred_check_branch
      %46 = sbr.rel (0) target = $region25
    $region24: #{lstm_encoder_forward.1} parent=1 // pred_region
      %47 = dma.done [#allocation3], 2048
    $region25: #{lstm_encoder_forward.1} parent=1 // pred_fallthru
      _
    // Predicated region
    $region26: #{lstm_encoder_forward.1} parent=1 // pred_check
      _
    $region27: #{lstm_encoder_forward.1} parent=1 // pred_check_branch
      %49 = sbr.rel (0) target = $region29
    $region28: #{lstm_encoder_forward.1} parent=1 // pred_region
      %50 = dma.done [#allocation6], 32
    $region29: #{lstm_encoder_forward.1} parent=1 // pred_fallthru
      _
    %v51 = vld [vmem:[%s0] sm:$0x1]
    %v52 = vld [vmem:[%s1] sm:$0x1]
    %v53 = vld [vmem:[%s2] sm:$0x1]
    %v55 = vlaneseq
    %v56 = vshrl.u32 %v55, 7
    %v57 = vsub.s32 0, %v56
    %v58 = vrot.slane %v52, %v57
    %59 = vrot.lane.b32.xlu0 %v58, 32
    %v60 = vpop.permute.xlu0 %59
    %vm62 = vcmask 261120
    %v63 = vsel %vm62, %v51, %v60
    %v64 = vld [vmem:[#allocation2] sm:$0xff]
    %v65 = vld [vmem:[#allocation2 + $0x8] sm:$0xff]
    %v66 = vld [vmem:[#allocation2 + $0x10] sm:$0xff]
    %v67 = vld [vmem:[#allocation2 + $0x18] sm:$0xff]
    %v68 = vld [vmem:[#allocation2 + $0x20] sm:$0xff]
    %v69 = vld [vmem:[#allocation2 + $0x28] sm:$0xff]
    %v70 = vld [vmem:[#allocation2 + $0x30] sm:$0xff]
    %v71 = vld [vmem:[#allocation2 + $0x38] sm:$0xff]
    %v72 = vld [vmem:[#allocation5] sm:$0x1]
    %vm73 = vcmask 523264
    %v75 = vsel %vm73, %v63, 0
    %77 = vmatprep.subr.mxu0 0.0
    %78 = vmatpush1.msra.mxu0 %v64
    %79 = vmatprep.subr.mxu0 0.0
    %80 = vmatpush1.msra.mxu0 %v65
    %81 = vmatprep.subr.mxu0 0.0
    %82 = vmatpush1.msra.mxu0 %v66
    %83 = vmatprep.subr.mxu0 0.0
    %84 = vmatpush1.msra.mxu0 %v67
    %85 = vmatprep.subr.mxu0 0.0
    %86 = vmatpush1.msra.mxu0 %v68
    %87 = vmatprep.subr.mxu0 0.0
    %88 = vmatpush1.msra.mxu0 %v69
    %89 = vmatprep.subr.mxu0 0.0
    %90 = vmatpush1.msra.mxu0 %v70
    %91 = vmatprep.subr.mxu0 0.0
    %92 = vmatpush1.msra.mxu0 %v71
    %93 = vmatprep.subr.mxu0 0.0
    %94 = vmatpush1.msra.mxu0 0.0
    %95 = vmatprep.subr.mxu0 0.0
    %96 = vmatpush1.msra.mxu0 0.0
    %97 = vmatprep.subr.mxu0 0.0
    %98 = vmatpush1.msra.mxu0 0.0
    %99 = vmatprep.subr.mxu0 0.0
    %100 = vmatpush1.msra.mxu0 0.0
    %101 = vmatprep.subr.mxu0 0.0
    %102 = vmatpush1.msra.mxu0 0.0
    %103 = vmatprep.subr.mxu0 0.0
    %104 = vmatpush1.msra.mxu0 0.0
    %105 = vmatprep.subr.mxu0 0.0
    %106 = vmatpush1.msra.mxu0 0.0
    %107 = vmatprep.subr.mxu0 0.0
    %108 = vmatpush1.msra.mxu0 0.0
    %109 = vmatprep.subr.mxu0 0.0
    %110 = vmatpush1.msra.mxu0 0.0
    %111 = vmatprep.subr.mxu0 0.0
    %112 = vmatpush1.msra.mxu0 0.0
    %113 = vmatprep.subr.mxu0 0.0
    %114 = vmatpush1.msra.mxu0 0.0
    %115 = vmatprep.subr.mxu0 0.0
    %116 = vmatpush1.msra.mxu0 0.0
    %117 = vmatprep.subr.mxu0 0.0
    %118 = vmatpush1.msra.mxu0 0.0
    %119 = vmatprep.subr.mxu0 0.0
    %120 = vmatpush1.msra.mxu0 0.0
    %121 = vmatprep.subr.mxu0 0.0
    %122 = vmatpush1.msra.mxu0 0.0
    %123 = vmatprep.subr.mxu0 0.0
    %124 = vmatpush1.msra.mxu0 0.0
    %125 = vmatprep.subr.mxu0 0.0
    %126 = vmatpush1.msra.mxu0 0.0
    %127 = vmatprep.subr.mxu0 0.0
    %128 = vmatpush1.msra.mxu0 0.0
    %129 = vmatprep.subr.mxu0 0.0
    %130 = vmatpush1.msra.mxu0 0.0
    %131 = vmatprep.subr.mxu0 0.0
    %132 = vmatpush1.msra.mxu0 0.0
    %133 = vmatprep.subr.mxu0 0.0
    %134 = vmatpush1.msra.mxu0 0.0
    %135 = vmatprep.subr.mxu0 0.0
    %136 = vmatpush1.msra.mxu0 0.0
    %137 = vmatprep.subr.mxu0 0.0
    %138 = vmatpush1.msra.mxu0 0.0
    %139 = vmatprep.subr.mxu0 0.0
    %140 = vmatpush1.msra.mxu0 0.0
    %141 = vmatprep.mubr.f32.mxu0 0.0
    %142 = vmatmul.mubr.f32.gmra.mrb[0].mxu0 %v75
    %v143 = vpop.f32.mrb[0].mxu0
    %v144 = vadd.f32 %v72, %v143
    %v145 = vpop.f32.mrb[0].mxu0
    %146 = vdwg.mxu0
    %v147 = vxor.u32 %v144, 2147483648
    %v148 = vmul.f32 %v147, 1.442695
    %v149 = vpow.pop %v148
    %v150 = vadd.f32 %v149, 1.0
    %v151 = vrcp.pop %v150
    %v152 = vmul.f32 1.0, %v151
    %v153 = vtanh.pop %v144
    %v155 = vlaneseq
    %v156 = vshrl.u32 %v155, 7
    %v157 = vsub.s32 0, %v156
    %v158 = vrot.slane %v53, %v157
    %159 = vrot.lane.b32.xlu0 %v158, 32
    %v160 = vpop.permute.xlu0 %159
    %v162 = vmul.f32 %v152, %v160
    %164 = vrot.lane.b32.xlu0 %v153, 32
    %v165 = vpop.permute.xlu0 %164
    %v167 = vmul.f32 %v152, %v165
    %169 = vrot.lane.b32.xlu0 %v167, 32
    %v170 = vpop.permute.xlu0 %169
    %v172 = vadd.f32 %v162, %v170
    %v173 = vtanh.pop %v172
    %175 = vrot.lane.b32.xlu0 %v173, 32
    %v176 = vpop.permute.xlu0 %175
    %v178 = vmul.f32 %v152, %v176
    %180 = vrot.lane.b32.xlu0 %v178, 64
    %v181 = vpop.permute.xlu0 %180
    %vm183 = vcmask 253952
    %184 = vst.msk [vmem:[%s5] sm:$0x1] %vm183, %v181
    %186 = vrot.lane.b32.xlu0 %v172, 96
    %v187 = vpop.permute.xlu0 %186
    %189 = vst.msk [vmem:[#allocation7] sm:$0x1] %vm183, %v187
    %s190 = scalar_lea.vmem %s1, 1
    %v191 = vld [vmem:[%s190] sm:$0x1]
    %s192 = scalar_lea.vmem %s2, 1
    %v193 = vld [vmem:[%s192] sm:$0x1]
    %v195 = vlaneseq
    %v196 = vshrl.u32 %v195, 7
    %v197 = vsub.s32 0, %v196
    %v198 = vrot.slane %v191, %v197
    %199 = vrot.lane.b32.xlu0 %v198, 32
    %v200 = vpop.permute.xlu0 %199
    %v202 = vsel %vm62, %v181, %v200
    %s203 = scalar_lea.vmem [#allocation2], 64
    %v204 = vld [vmem:[%s203] sm:$0xff]
    %v205 = vld [vmem:[%s203 + $0x8] sm:$0xff]
    %v206 = vld [vmem:[%s203 + $0x10] sm:$0xff]
    %v207 = vld [vmem:[%s203 + $0x18] sm:$0xff]
    %v208 = vld [vmem:[%s203 + $0x20] sm:$0xff]
    %v209 = vld [vmem:[%s203 + $0x28] sm:$0xff]
    %v210 = vld [vmem:[%s203 + $0x30] sm:$0xff]
    %v211 = vld [vmem:[%s203 + $0x38] sm:$0xff]
    %s212 = scalar_lea.vmem [#allocation5], 1
    %v213 = vld [vmem:[%s212] sm:$0x1]
    %v215 = vsel %vm73, %v202, 0
    %217 = vmatprep.subr.mxu0 0.0
    %218 = vmatpush1.msra.mxu0 %v204
    %219 = vmatprep.subr.mxu0 0.0
    %220 = vmatpush1.msra.mxu0 %v205
    %221 = vmatprep.subr.mxu0 0.0
    %222 = vmatpush1.msra.mxu0 %v206
    %223 = vmatprep.subr.mxu0 0.0
    %224 = vmatpush1.msra.mxu0 %v207
    %225 = vmatprep.subr.mxu0 0.0
    %226 = vmatpush1.msra.mxu0 %v208
    %227 = vmatprep.subr.mxu0 0.0
    %228 = vmatpush1.msra.mxu0 %v209
    %229 = vmatprep.subr.mxu0 0.0
    %230 = vmatpush1.msra.mxu0 %v210
    %231 = vmatprep.subr.mxu0 0.0
    %232 = vmatpush1.msra.mxu0 %v211
    %233 = vmatprep.subr.mxu0 0.0
    %234 = vmatpush1.msra.mxu0 0.0
    %235 = vmatprep.subr.mxu0 0.0
    %236 = vmatpush1.msra.mxu0 0.0
    %237 = vmatprep.subr.mxu0 0.0
    %238 = vmatpush1.msra.mxu0 0.0
    %239 = vmatprep.subr.mxu0 0.0
    %240 = vmatpush1.msra.mxu0 0.0
    %241 = vmatprep.subr.mxu0 0.0
    %242 = vmatpush1.msra.mxu0 0.0
    %243 = vmatprep.subr.mxu0 0.0
    %244 = vmatpush1.msra.mxu0 0.0
    %245 = vmatprep.subr.mxu0 0.0
    %246 = vmatpush1.msra.mxu0 0.0
    %247 = vmatprep.subr.mxu0 0.0
    %248 = vmatpush1.msra.mxu0 0.0
    %249 = vmatprep.subr.mxu0 0.0
    %250 = vmatpush1.msra.mxu0 0.0
    %251 = vmatprep.subr.mxu0 0.0
    %252 = vmatpush1.msra.mxu0 0.0
    %253 = vmatprep.subr.mxu0 0.0
    %254 = vmatpush1.msra.mxu0 0.0
    %255 = vmatprep.subr.mxu0 0.0
    %256 = vmatpush1.msra.mxu0 0.0
    %257 = vmatprep.subr.mxu0 0.0
    %258 = vmatpush1.msra.mxu0 0.0
    %259 = vmatprep.subr.mxu0 0.0
    %260 = vmatpush1.msra.mxu0 0.0
    %261 = vmatprep.subr.mxu0 0.0
    %262 = vmatpush1.msra.mxu0 0.0
    %263 = vmatprep.subr.mxu0 0.0
    %264 = vmatpush1.msra.mxu0 0.0
    %265 = vmatprep.subr.mxu0 0.0
    %266 = vmatpush1.msra.mxu0 0.0
    %267 = vmatprep.subr.mxu0 0.0
    %268 = vmatpush1.msra.mxu0 0.0
    %269 = vmatprep.subr.mxu0 0.0
    %270 = vmatpush1.msra.mxu0 0.0
    %271 = vmatprep.subr.mxu0 0.0
    %272 = vmatpush1.msra.mxu0 0.0
    %273 = vmatprep.subr.mxu0 0.0
    %274 = vmatpush1.msra.mxu0 0.0
    %275 = vmatprep.subr.mxu0 0.0
    %276 = vmatpush1.msra.mxu0 0.0
    %277 = vmatprep.subr.mxu0 0.0
    %278 = vmatpush1.msra.mxu0 0.0
    %279 = vmatprep.subr.mxu0 0.0
    %280 = vmatpush1.msra.mxu0 0.0
    %281 = vmatprep.mubr.f32.mxu0 0.0
    %282 = vmatmul.mubr.f32.gmra.mrb[0].mxu0 %v215
    %v283 = vpop.f32.mrb[0].mxu0
    %v284 = vadd.f32 %v213, %v283
    %v285 = vpop.f32.mrb[0].mxu0
    %286 = vdwg.mxu0
    %v287 = vxor.u32 %v284, 2147483648
    %v288 = vmul.f32 %v287, 1.442695
    %v289 = vpow.pop %v288
    %v290 = vadd.f32 %v289, 1.0
    %v291 = vrcp.pop %v290
    %v292 = vmul.f32 1.0, %v291
    %v293 = vtanh.pop %v284
    %v295 = vlaneseq
    %v296 = vshrl.u32 %v295, 7
    %v297 = vsub.s32 0, %v296
    %v298 = vrot.slane %v193, %v297
    %299 = vrot.lane.b32.xlu0 %v298, 32
    %v300 = vpop.permute.xlu0 %299
    %v302 = vmul.f32 %v292, %v300
    %304 = vrot.lane.b32.xlu0 %v293, 32
    %v305 = vpop.permute.xlu0 %304
    %v307 = vmul.f32 %v292, %v305
    %309 = vrot.lane.b32.xlu0 %v307, 32
    %v310 = vpop.permute.xlu0 %309
    %v312 = vadd.f32 %v302, %v310
    %v313 = vtanh.pop %v312
    %315 = vrot.lane.b32.xlu0 %v313, 32
    %v316 = vpop.permute.xlu0 %315
    %v318 = vmul.f32 %v292, %v316
    %320 = vrot.lane.b32.xlu0 %v318, 64
    %v321 = vpop.permute.xlu0 %320
    %s323 = scalar_lea.vmem %s5, 1
    %324 = vst.msk [vmem:[%s323] sm:$0x1] %vm183, %v321
    %326 = vrot.lane.b32.xlu0 %v312, 96
    %v327 = vpop.permute.xlu0 %326
    %s329 = scalar_lea.vmem [#allocation7], 1
    %330 = vst.msk [vmem:[%s329] sm:$0x1] %vm183, %v327
    // Predicated region
    $region30: #{lstm_encoder_forward.1} parent=1 // pred_check
      _
    $region31: #{lstm_encoder_forward.1} parent=1 // pred_check_branch
      %332 = sbr.rel (0) target = $region33
    $region32: #{lstm_encoder_forward.1} parent=1 // pred_region
      _
    $region33: #{lstm_encoder_forward.1} parent=1 // pred_fallthru
      _
    // Predicated region
    $region34: #{lstm_encoder_forward.1} parent=1 // pred_check
      _
    $region35: #{lstm_encoder_forward.1} parent=1 // pred_check_branch
      %334 = sbr.rel (0) target = $region37
    $region36: #{lstm_encoder_forward.1} parent=1 // pred_region
      %s336 = ssub.s32 32, 32
      %337 = vsyncadd [#allocation4], %s336
      %s338 = sshll.u32 [#allocation7], 4
      %s339 = int_to_ptr.vmem [resolvable:$true] %s338
      %344 = dma.vmem_to_hbm [thread:$0]  %s339, 32, %s6, [#allocation4], 16, 16, 1
    $region37: #{lstm_encoder_forward.1} parent=1 // pred_fallthru
      _
    // Predicated region
    $region38: #{lstm_encoder_forward.1} parent=1 // pred_check
      _
    $region39: #{lstm_encoder_forward.1} parent=1 // pred_check_branch
      %346 = sbr.rel (0) target = $region41
    $region40: #{lstm_encoder_forward.1} parent=1 // pred_region
      _
    $region41: #{lstm_encoder_forward.1} parent=1 // pred_fallthru
      _
    // Predicated region
    $region42: #{lstm_encoder_forward.1} parent=1 // pred_check
      _
    $region43: #{lstm_encoder_forward.1} parent=1 // pred_check_branch
      %348 = sbr.rel (0) target = $region45
    $region44: #{lstm_encoder_forward.1} parent=1 // pred_region
      %349 = dma.done [#allocation4], 32
    $region45: #{lstm_encoder_forward.1} parent=1 // pred_fallthru
      _
    %350 = vsyncpa [#allocation3], 1
    %351 = vsyncpa [#allocation6], 1
    %352 = vsyncpa [#allocation4], 1

</llo_original>
